<compile_context>
chip_gen: v7x
topology: tpu7x:2x2x1
jax: 0.10.0
libtpu: 0.0.40
codegen_flags: <defaults>
</compile_context>

<pallas_src>
import functools

import jax
import jax.numpy as jnp
from jax.experimental import pallas as pl
from jax.experimental.pallas import tpu as pltpu


def _round_up(a, m):
    return (a + m - 1) // m * m


def mlp_kernel(valid_out, x_ref, *refs):
    # refs = (w0, b0, w1, b1, ..., wL-1, bL-1, out_ref)
    out_ref = refs[-1]
    param_refs = refs[:-1]
    n_layers = len(param_refs) // 2

    h = x_ref[...].astype(jnp.float32)
    for l in range(n_layers):
        w = param_refs[2 * l][...]              # bf16 (pre-cast in wrapper)
        b = param_refs[2 * l + 1][...]          # f32, shape (1, out_dim) -> broadcasts
        h = jnp.dot(h.astype(jnp.bfloat16), w,
                    preferred_element_type=jnp.float32) + b
        if l < n_layers - 1:
            h = jnp.maximum(h, 0.0)             # ReLU
        else:
            h = jax.nn.sigmoid(h)               # Sigmoid on the last linear layer

    # Zero the padded output lanes BEFORE the L1 norm (sigmoid(0) = 0.5 would
    # otherwise corrupt the denominator).
    out_pad = h.shape[-1]
    if valid_out < out_pad:
        lane = jax.lax.broadcasted_iota(jnp.int32, h.shape, dimension=1)
        h = jnp.where(lane < valid_out, h, 0.0)

    # F.normalize(p=1, dim=-1): x / max(||x||_1, eps), eps = 1e-12
    denom = jnp.maximum(jnp.sum(jnp.abs(h), axis=-1, keepdims=True), 1e-12)
    out_ref[...] = (h / denom).astype(out_ref.dtype)


def make_mlp_params(key, in_features, out_features, hidden_features=64, hidden_layers=3):
    """Deterministic parameter init (same shapes as the PyTorch module)."""
    dims = [in_features, hidden_features // 4, hidden_features]
    dims += [hidden_features] * hidden_layers
    dims += [out_features]

    params = []
    for i in range(len(dims) - 1):
        key, kw, kb = jax.random.split(key, 3)
        fan_in = dims[i]
        bound = 1.0 / (fan_in ** 0.5)
        # stored as (in, out): equivalent to PyTorch weight.T
        w = jax.random.uniform(kw, (dims[i], dims[i + 1]), jnp.float32, -bound, bound)
        b = jax.random.uniform(kb, (1, dims[i + 1]), jnp.float32, -bound, bound)
        params.append((w, b))
    return params


@functools.partial(jax.jit, static_argnames=("block_batch",))
def mlp_forward(x, params_flat, *, block_batch=1024):
    """x: (B, in_features) float32. params_flat: tuple of (w0, b0, w1, b1, ...)."""
    B, in_f = x.shape
    out_f = params_flat[-2].shape[1]
    n_layers = len(params_flat) // 2

    # ---- lane-dense output store: pad last layer to a multiple of 128 lanes ----
    out_pad = _round_up(out_f, 128)
    w_last = params_flat[-2]
    b_last = params_flat[-1]
    if out_pad != out_f:
        w_last = jnp.pad(w_last, ((0, 0), (0, out_pad - out_f)))
        b_last = jnp.pad(b_last, ((0, 0), (0, out_pad - out_f)))

    # Weights pre-cast to bf16 (full-rate MXU, f32 accumulation); biases stay f32.
    prepped = []
    for l in range(n_layers):
        w = params_flat[2 * l] if l < n_layers - 1 else w_last
        b = params_flat[2 * l + 1] if l < n_layers - 1 else b_last
        prepped.append(w.astype(jnp.bfloat16))
        prepped.append(b.astype(jnp.float32))

    # ---- batch tiling: large blocks, pad batch to a whole number of blocks ----
    bb = min(block_batch, _round_up(B, 8))
    B_pad = _round_up(B, bb)
    if B_pad != B:
        x = jnp.pad(x, ((0, B_pad - B), (0, 0)))
    n_blocks = B_pad // bb

    x_spec = pl.BlockSpec((bb, in_f), lambda i: (i, 0))
    param_specs = [pl.BlockSpec(p.shape, lambda i: (0, 0)) for p in prepped]
    out_spec = pl.BlockSpec((bb, out_pad), lambda i: (i, 0))

    out = pl.pallas_call(
        functools.partial(mlp_kernel, out_f),
        out_shape=jax.ShapeDtypeStruct((B_pad, out_pad), jnp.float32),
        grid_spec=pltpu.PrefetchScalarGridSpec(
            num_scalar_prefetch=0,
            grid=(n_blocks,),
            in_specs=[x_spec] + param_specs,
            out_specs=out_spec,
        ),
        compiler_params=pltpu.CompilerParams(
            dimension_semantics=("parallel",),
        ),
    )(x, *prepped)

    # Drop batch padding and padded output lanes.
    return out[:B, :out_f]


def mlp_reference(x, params_flat):
    """Pure-JAX f32 reference for sanity checking."""
    n_layers = len(params_flat) // 2
    h = x
    for l in range(n_layers):
        w = params_flat[2 * l]
        b = params_flat[2 * l + 1]
        h = h @ w + b
        if l < n_layers - 1:
            h = jnp.maximum(h, 0.0)
        else:
            h = jax.nn.sigmoid(h)
    denom = jnp.maximum(jnp.sum(jnp.abs(h), axis=-1, keepdims=True), 1e-12)
    return h / denom


if __name__ == "__main__":
    key = jax.random.PRNGKey(0)
    kx, kx2, kp = jax.random.split(key, 3)

    in_features = 4
    out_features = 16
    hidden_features = 64
    hidden_layers = 3

    params = make_mlp_params(kp, in_features, out_features,
                             hidden_features, hidden_layers)
    params_flat = tuple(p for wb in params for p in wb)

    # Small, module-consistent case (single block).
    batch = 8
    x = jax.random.normal(kx, (batch, in_features), jnp.float32)
    out = jax.block_until_ready(mlp_forward(x, params_flat))
    ref = mlp_reference(x, params_flat)
    assert out.shape == (batch, out_features)
    # bf16 MXU inputs -> looser tolerance than a pure-f32 comparison.
    assert jnp.allclose(out, ref, atol=1e-2, rtol=1e-2), "mismatch vs reference (small batch)"
    # L1-normalized rows should sum to ~1 (all sigmoid outputs are positive).
    assert jnp.allclose(jnp.sum(out, axis=-1), 1.0, atol=1e-4)

    # Multi-block / batch-padding path (block_batch=512 -> 3 blocks for B=1536).
    batch2 = 1536
    x2 = jax.random.normal(kx2, (batch2, in_features), jnp.float32)
    out2 = jax.block_until_ready(mlp_forward(x2, params_flat, block_batch=512))
    ref2 = mlp_reference(x2, params_flat)
    assert out2.shape == (batch2, out_features)
    assert jnp.allclose(out2, ref2, atol=1e-2, rtol=1e-2), "mismatch vs reference (large batch)"
    assert jnp.allclose(jnp.sum(out2, axis=-1), 1.0, atol=1e-4)

    print("KERNEL_OK")
</pallas_src>

<mosaic_0001>
module attributes {stable_mosaic.version = 11 : i64} {
  func.func @mlp_kernel(%arg0: i32, %arg1: memref<8x4xf32, #tpu.memory_space<vmem>>, %arg2: memref<4x16xbf16, #tpu.memory_space<vmem>>, %arg3: memref<1x16xf32, #tpu.memory_space<vmem>>, %arg4: memref<16x64xbf16, #tpu.memory_space<vmem>>, %arg5: memref<1x64xf32, #tpu.memory_space<vmem>>, %arg6: memref<64x64xbf16, #tpu.memory_space<vmem>>, %arg7: memref<1x64xf32, #tpu.memory_space<vmem>>, %arg8: memref<64x64xbf16, #tpu.memory_space<vmem>>, %arg9: memref<1x64xf32, #tpu.memory_space<vmem>>, %arg10: memref<64x64xbf16, #tpu.memory_space<vmem>>, %arg11: memref<1x64xf32, #tpu.memory_space<vmem>>, %arg12: memref<64x128xbf16, #tpu.memory_space<vmem>>, %arg13: memref<1x128xf32, #tpu.memory_space<vmem>>, %arg14: memref<8x128xf32, #tpu.memory_space<vmem>>) attributes {dimension_semantics = [#tpu.dimension_semantics<parallel>], iteration_bounds = array<i64: 1>, scalar_prefetch = 0 : i64, scratch_operands = 0 : i64, tpu.core_type = #tpu.core_type<tc>, window_params = [{transform_indices = @transform_0, window_bounds = array<i64: 8, 4>}, {pipeline_mode = #tpu.pipeline_mode<synchronous>, transform_indices = @transform_1, window_bounds = array<i64: 4, 16>}, {pipeline_mode = #tpu.pipeline_mode<synchronous>, transform_indices = @transform_2, window_bounds = array<i64: 1, 16>}, {pipeline_mode = #tpu.pipeline_mode<synchronous>, transform_indices = @transform_3, window_bounds = array<i64: 16, 64>}, {pipeline_mode = #tpu.pipeline_mode<synchronous>, transform_indices = @transform_4, window_bounds = array<i64: 1, 64>}, {pipeline_mode = #tpu.pipeline_mode<synchronous>, transform_indices = @transform_5, window_bounds = array<i64: 64, 64>}, {pipeline_mode = #tpu.pipeline_mode<synchronous>, transform_indices = @transform_6, window_bounds = array<i64: 1, 64>}, {pipeline_mode = #tpu.pipeline_mode<synchronous>, transform_indices = @transform_7, window_bounds = array<i64: 64, 64>}, {pipeline_mode = #tpu.pipeline_mode<synchronous>, transform_indices = @transform_8, window_bounds = array<i64: 1, 64>}, {pipeline_mode = #tpu.pipeline_mode<synchronous>, transform_indices = @transform_9, window_bounds = array<i64: 64, 64>}, {pipeline_mode = #tpu.pipeline_mode<synchronous>, transform_indices = @transform_10, window_bounds = array<i64: 1, 64>}, {pipeline_mode = #tpu.pipeline_mode<synchronous>, transform_indices = @transform_11, window_bounds = array<i64: 64, 128>}, {pipeline_mode = #tpu.pipeline_mode<synchronous>, transform_indices = @transform_12, window_bounds = array<i64: 1, 128>}, {transform_indices = @transform_13, window_bounds = array<i64: 8, 128>}]} {
    %c0 = arith.constant 0 : index
    %c0_0 = arith.constant 0 : index
    %0 = vector.load %arg1[%c0, %c0_0] : memref<8x4xf32, #tpu.memory_space<vmem>>, vector<8x4xf32>
    %c0_1 = arith.constant 0 : index
    %c0_2 = arith.constant 0 : index
    %1 = vector.load %arg2[%c0_1, %c0_2] : memref<4x16xbf16, #tpu.memory_space<vmem>>, vector<4x16xbf16>
    %c0_3 = arith.constant 0 : index
    %c0_4 = arith.constant 0 : index
    %2 = vector.load %arg3[%c0_3, %c0_4] : memref<1x16xf32, #tpu.memory_space<vmem>>, vector<1x16xf32>
    %3 = arith.truncf %0 : vector<8x4xf32> to vector<8x4xbf16>
    %cst = arith.constant dense<0.000000e+00> : vector<8x16xf32>
    %4 = tpu.matmul %3, %1, %cst {dimension_numbers = #tpu.dot_dimension_numbers<[1], [0], [0], [1], [0, 0, 1, 1], [], []>} : vector<8x4xbf16>, vector<4x16xbf16>, vector<8x16xf32> -> vector<8x16xf32>
    %5 = vector.broadcast %2 : vector<1x16xf32> to vector<8x16xf32>
    %6 = arith.addf %4, %5 : vector<8x16xf32>
    %cst_5 = arith.constant 0.000000e+00 : f32
    %7 = vector.broadcast %cst_5 : f32 to vector<8x16xf32>
    %8 = arith.maximumf %6, %7 : vector<8x16xf32>
    %c0_6 = arith.constant 0 : index
    %c0_7 = arith.constant 0 : index
    %9 = vector.load %arg4[%c0_6, %c0_7] : memref<16x64xbf16, #tpu.memory_space<vmem>>, vector<16x64xbf16>
    %c0_8 = arith.constant 0 : index
    %c0_9 = arith.constant 0 : index
    %10 = vector.load %arg5[%c0_8, %c0_9] : memref<1x64xf32, #tpu.memory_space<vmem>>, vector<1x64xf32>
    %11 = arith.truncf %8 : vector<8x16xf32> to vector<8x16xbf16>
    %cst_10 = arith.constant dense<0.000000e+00> : vector<8x64xf32>
    %12 = tpu.matmul %11, %9, %cst_10 {dimension_numbers = #tpu.dot_dimension_numbers<[1], [0], [0], [1], [0, 0, 1, 1], [], []>} : vector<8x16xbf16>, vector<16x64xbf16>, vector<8x64xf32> -> vector<8x64xf32>
    %13 = vector.broadcast %10 : vector<1x64xf32> to vector<8x64xf32>
    %14 = arith.addf %12, %13 : vector<8x64xf32>
    %cst_11 = arith.constant 0.000000e+00 : f32
    %15 = vector.broadcast %cst_11 : f32 to vector<8x64xf32>
    %16 = arith.maximumf %14, %15 : vector<8x64xf32>
    %c0_12 = arith.constant 0 : index
    %c0_13 = arith.constant 0 : index
    %17 = vector.load %arg6[%c0_12, %c0_13] : memref<64x64xbf16, #tpu.memory_space<vmem>>, vector<64x64xbf16>
    %c0_14 = arith.constant 0 : index
    %c0_15 = arith.constant 0 : index
    %18 = vector.load %arg7[%c0_14, %c0_15] : memref<1x64xf32, #tpu.memory_space<vmem>>, vector<1x64xf32>
    %19 = arith.truncf %16 : vector<8x64xf32> to vector<8x64xbf16>
    %cst_16 = arith.constant dense<0.000000e+00> : vector<8x64xf32>
    %20 = tpu.matmul %19, %17, %cst_16 {dimension_numbers = #tpu.dot_dimension_numbers<[1], [0], [0], [1], [0, 0, 1, 1], [], []>} : vector<8x64xbf16>, vector<64x64xbf16>, vector<8x64xf32> -> vector<8x64xf32>
    %21 = vector.broadcast %18 : vector<1x64xf32> to vector<8x64xf32>
    %22 = arith.addf %20, %21 : vector<8x64xf32>
    %cst_17 = arith.constant 0.000000e+00 : f32
    %23 = vector.broadcast %cst_17 : f32 to vector<8x64xf32>
    %24 = arith.maximumf %22, %23 : vector<8x64xf32>
    %c0_18 = arith.constant 0 : index
    %c0_19 = arith.constant 0 : index
    %25 = vector.load %arg8[%c0_18, %c0_19] : memref<64x64xbf16, #tpu.memory_space<vmem>>, vector<64x64xbf16>
    %c0_20 = arith.constant 0 : index
    %c0_21 = arith.constant 0 : index
    %26 = vector.load %arg9[%c0_20, %c0_21] : memref<1x64xf32, #tpu.memory_space<vmem>>, vector<1x64xf32>
    %27 = arith.truncf %24 : vector<8x64xf32> to vector<8x64xbf16>
    %cst_22 = arith.constant dense<0.000000e+00> : vector<8x64xf32>
    %28 = tpu.matmul %27, %25, %cst_22 {dimension_numbers = #tpu.dot_dimension_numbers<[1], [0], [0], [1], [0, 0, 1, 1], [], []>} : vector<8x64xbf16>, vector<64x64xbf16>, vector<8x64xf32> -> vector<8x64xf32>
    %29 = vector.broadcast %26 : vector<1x64xf32> to vector<8x64xf32>
    %30 = arith.addf %28, %29 : vector<8x64xf32>
    %cst_23 = arith.constant 0.000000e+00 : f32
    %31 = vector.broadcast %cst_23 : f32 to vector<8x64xf32>
    %32 = arith.maximumf %30, %31 : vector<8x64xf32>
    %c0_24 = arith.constant 0 : index
    %c0_25 = arith.constant 0 : index
    %33 = vector.load %arg10[%c0_24, %c0_25] : memref<64x64xbf16, #tpu.memory_space<vmem>>, vector<64x64xbf16>
    %c0_26 = arith.constant 0 : index
    %c0_27 = arith.constant 0 : index
    %34 = vector.load %arg11[%c0_26, %c0_27] : memref<1x64xf32, #tpu.memory_space<vmem>>, vector<1x64xf32>
    %35 = arith.truncf %32 : vector<8x64xf32> to vector<8x64xbf16>
    %cst_28 = arith.constant dense<0.000000e+00> : vector<8x64xf32>
    %36 = tpu.matmul %35, %33, %cst_28 {dimension_numbers = #tpu.dot_dimension_numbers<[1], [0], [0], [1], [0, 0, 1, 1], [], []>} : vector<8x64xbf16>, vector<64x64xbf16>, vector<8x64xf32> -> vector<8x64xf32>
    %37 = vector.broadcast %34 : vector<1x64xf32> to vector<8x64xf32>
    %38 = arith.addf %36, %37 : vector<8x64xf32>
    %cst_29 = arith.constant 0.000000e+00 : f32
    %39 = vector.broadcast %cst_29 : f32 to vector<8x64xf32>
    %40 = arith.maximumf %38, %39 : vector<8x64xf32>
    %c0_30 = arith.constant 0 : index
    %c0_31 = arith.constant 0 : index
    %41 = vector.load %arg12[%c0_30, %c0_31] : memref<64x128xbf16, #tpu.memory_space<vmem>>, vector<64x128xbf16>
    %c0_32 = arith.constant 0 : index
    %c0_33 = arith.constant 0 : index
    %42 = vector.load %arg13[%c0_32, %c0_33] : memref<1x128xf32, #tpu.memory_space<vmem>>, vector<1x128xf32>
    %43 = arith.truncf %40 : vector<8x64xf32> to vector<8x64xbf16>
    %cst_34 = arith.constant dense<0.000000e+00> : vector<8x128xf32>
    %44 = tpu.matmul %43, %41, %cst_34 {dimension_numbers = #tpu.dot_dimension_numbers<[1], [0], [0], [1], [0, 0, 1, 1], [], []>} : vector<8x64xbf16>, vector<64x128xbf16>, vector<8x128xf32> -> vector<8x128xf32>
    %45 = vector.broadcast %42 : vector<1x128xf32> to vector<8x128xf32>
    %46 = arith.addf %44, %45 : vector<8x128xf32>
    %47 = arith.negf %46 : vector<8x128xf32>
    %48 = math.exp %47 : vector<8x128xf32>
    %cst_35 = arith.constant 1.000000e+00 : f32
    %49 = vector.broadcast %cst_35 : f32 to vector<8x128xf32>
    %50 = arith.addf %49, %48 : vector<8x128xf32>
    %51 = arith.divf %49, %50 : vector<8x128xf32>
    %52 = tpu.iota {dimensions = array<i32: 1>} : vector<8x128xi32>
    %c16_i32 = arith.constant 16 : i32
    %53 = vector.broadcast %c16_i32 : i32 to vector<8x128xi32>
    %54 = arith.cmpi slt, %52, %53 : vector<8x128xi32>
    %cst_36 = arith.constant 0.000000e+00 : f32
    %55 = vector.broadcast %cst_36 : f32 to vector<8x128xf32>
    %56 = arith.select %54, %51, %55 : vector<8x128xi1>, vector<8x128xf32>
    %57 = math.absf %56 : vector<8x128xf32>
    %cst_37 = arith.constant dense<0.000000e+00> : vector<8xf32>
    %58 = vector.multi_reduction <add>, %57, %cst_37 [1] : vector<8x128xf32> to vector<8xf32>
    %59 = vector.shape_cast %58 : vector<8xf32> to vector<8x1xf32>
    %cst_38 = arith.constant 9.99999996E-13 : f32
    %60 = vector.broadcast %cst_38 : f32 to vector<8x1xf32>
    %61 = arith.maximumf %59, %60 : vector<8x1xf32>
    %62 = vector.broadcast %61 : vector<8x1xf32> to vector<8x128xf32>
    %63 = arith.divf %56, %62 : vector<8x128xf32>
    %c0_39 = arith.constant 0 : index
    %c0_40 = arith.constant 0 : index
    %64 = vector.load %arg14[%c0_39, %c0_40] : memref<8x128xf32, #tpu.memory_space<vmem>>, vector<8x128xf32>
    tpu.vector_store %arg14[%c0_39, %c0_40], %63 {strides = array<i32>} : memref<8x128xf32, #tpu.memory_space<vmem>>, vector<8x128xf32>,
    return
  }
  func.func @transform_0(%arg0: i32) -> (i32, i32) {
    %c0_i32 = arith.constant 0 : i32
    %c0_i32_0 = arith.constant 0 : i32
    return %arg0, %c0_i32 : i32, i32
  }
  func.func @transform_1(%arg0: i32) -> (i32, i32) {
    %c0_i32 = arith.constant 0 : i32
    %c0_i32_0 = arith.constant 0 : i32
    %c0_i32_1 = arith.constant 0 : i32
    return %c0_i32, %c0_i32_0 : i32, i32
  }
  func.func @transform_2(%arg0: i32) -> (i32, i32) {
    %c0_i32 = arith.constant 0 : i32
    %c0_i32_0 = arith.constant 0 : i32
    %c0_i32_1 = arith.constant 0 : i32
    return %c0_i32, %c0_i32_0 : i32, i32
  }
  func.func @transform_3(%arg0: i32) -> (i32, i32) {
    %c0_i32 = arith.constant 0 : i32
    %c0_i32_0 = arith.constant 0 : i32
    %c0_i32_1 = arith.constant 0 : i32
    return %c0_i32, %c0_i32_0 : i32, i32
  }
  func.func @transform_4(%arg0: i32) -> (i32, i32) {
    %c0_i32 = arith.constant 0 : i32
    %c0_i32_0 = arith.constant 0 : i32
    %c0_i32_1 = arith.constant 0 : i32
    return %c0_i32, %c0_i32_0 : i32, i32
  }
  func.func @transform_5(%arg0: i32) -> (i32, i32) {
    %c0_i32 = arith.constant 0 : i32
    %c0_i32_0 = arith.constant 0 : i32
    %c0_i32_1 = arith.constant 0 : i32
    return %c0_i32, %c0_i32_0 : i32, i32
  }
  func.func @transform_6(%arg0: i32) -> (i32, i32) {
    %c0_i32 = arith.constant 0 : i32
    %c0_i32_0 = arith.constant 0 : i32
    %c0_i32_1 = arith.constant 0 : i32
    return %c0_i32, %c0_i32_0 : i32, i32
  }
  func.func @transform_7(%arg0: i32) -> (i32, i32) {
    %c0_i32 = arith.constant 0 : i32
    %c0_i32_0 = arith.constant 0 : i32
    %c0_i32_1 = arith.constant 0 : i32
    return %c0_i32, %c0_i32_0 : i32, i32
  }
  func.func @transform_8(%arg0: i32) -> (i32, i32) {
    %c0_i32 = arith.constant 0 : i32
    %c0_i32_0 = arith.constant 0 : i32
    %c0_i32_1 = arith.constant 0 : i32
    return %c0_i32, %c0_i32_0 : i32, i32
  }
  func.func @transform_9(%arg0: i32) -> (i32, i32) {
    %c0_i32 = arith.constant 0 : i32
    %c0_i32_0 = arith.constant 0 : i32
    %c0_i32_1 = arith.constant 0 : i32
    return %c0_i32, %c0_i32_0 : i32, i32
  }
  func.func @transform_10(%arg0: i32) -> (i32, i32) {
    %c0_i32 = arith.constant 0 : i32
    %c0_i32_0 = arith.constant 0 : i32
    %c0_i32_1 = arith.constant 0 : i32
    return %c0_i32, %c0_i32_0 : i32, i32
  }
  func.func @transform_11(%arg0: i32) -> (i32, i32) {
    %c0_i32 = arith.constant 0 : i32
    %c0_i32_0 = arith.constant 0 : i32
    %c0_i32_1 = arith.constant 0 : i32
    return %c0_i32, %c0_i32_0 : i32, i32
  }
  func.func @transform_12(%arg0: i32) -> (i32, i32) {
    %c0_i32 = arith.constant 0 : i32
    %c0_i32_0 = arith.constant 0 : i32
    %c0_i32_1 = arith.constant 0 : i32
    return %c0_i32, %c0_i32_0 : i32, i32
  }
  func.func @transform_13(%arg0: i32) -> (i32, i32) {
    %c0_i32 = arith.constant 0 : i32
    %c0_i32_0 = arith.constant 0 : i32
    return %arg0, %c0_i32 : i32, i32
  }
}

</mosaic_0001>

<llo_original>
// kernel: mlp_forward.1
$region0: #{mlp_forward.1}
  #allocation0 [shape = 'u32[]', space=smem, size = 0x4, offset = 0x4, fixed_abs, tag = 'smem constant byte address 0x4 - core index']
  #allocation1 [shape = 'u32[144,128]{1,0:T(1,128)}', space=vmem, size = 0x12000, scoped, tag = 'internal scratch']
  %s0 = inlined_call_operand.vmem [shape: f32[8,4], index: 0, kind: input, shape index: {}]
  %s1 = inlined_call_operand.vmem [shape: bf16[4,16], index: 1, kind: input, shape index: {}]
  %s2 = inlined_call_operand.vmem [shape: f32[1,16], index: 2, kind: input, shape index: {}]
  %s3 = inlined_call_operand.vmem [shape: bf16[16,64], index: 3, kind: input, shape index: {}]
  %s4 = inlined_call_operand.vmem [shape: f32[1,64], index: 4, kind: input, shape index: {}]
  %s5 = inlined_call_operand.vmem [shape: bf16[64,64], index: 5, kind: input, shape index: {}]
  %s6 = inlined_call_operand.vmem [shape: f32[1,64], index: 6, kind: input, shape index: {}]
  %s7 = inlined_call_operand.vmem [shape: bf16[64,64], index: 7, kind: input, shape index: {}]
  %s8 = inlined_call_operand.vmem [shape: f32[1,64], index: 8, kind: input, shape index: {}]
  %s9 = inlined_call_operand.vmem [shape: bf16[64,64], index: 9, kind: input, shape index: {}]
  %s10 = inlined_call_operand.vmem [shape: f32[1,64], index: 10, kind: input, shape index: {}]
  %s11 = inlined_call_operand.vmem [shape: bf16[64,128], index: 11, kind: input, shape index: {}]
  %s12 = inlined_call_operand.vmem [shape: f32[1,128], index: 12, kind: input, shape index: {}]
  %s13 = inlined_call_operand.hbm [shape: f32[8,128], index: 13, kind: output, shape index: {}]
  %s14 = sld [smem:[#allocation0]]
  $region62: #{mlp_forward.1} parent=0
    _
  %s16 = ssub.s32 1, %s14
  %s17 = scalar_select 0, %s16, %s14
  $region1: #{mlp_forward.1} parent=0
    #allocation2 [shape = 'u8[4096]{0}', space=vmem, size = 0x1000, scoped, tag = 'output window, operand 0, single buffered']
    #allocation3 [shape = 's32[1]{0}', space=sflag, size = 0x4, scoped, tag = 'scoped memory for mlp_forward.1']
    %18 = vsyncpa [#allocation3], 0
    // Predicated region
    $region2: #{mlp_forward.1} parent=1 // pred_check
      _
    $region3: #{mlp_forward.1} parent=1 // pred_check_branch
      %20 = sbr.rel (0) target = $region5
    $region4: #{mlp_forward.1} parent=1 // pred_region
      _
    $region5: #{mlp_forward.1} parent=1 // pred_fallthru
      _
    // Predicated region
    $region6: #{mlp_forward.1} parent=1 // pred_check
      _
    $region7: #{mlp_forward.1} parent=1 // pred_check_branch
      %22 = sbr.rel (0) target = $region9
    $region8: #{mlp_forward.1} parent=1 // pred_region
      _
    $region9: #{mlp_forward.1} parent=1 // pred_fallthru
      _
    // Predicated region
    $region10: #{mlp_forward.1} parent=1 // pred_check
      _
    $region11: #{mlp_forward.1} parent=1 // pred_check_branch
      %24 = sbr.rel (0) target = $region13
    $region12: #{mlp_forward.1} parent=1 // pred_region
      _
    $region13: #{mlp_forward.1} parent=1 // pred_fallthru
      _
    // Predicated region
    $region14: #{mlp_forward.1} parent=1 // pred_check
      _
    $region15: #{mlp_forward.1} parent=1 // pred_check_branch
      %26 = sbr.rel (0) target = $region17
    $region16: #{mlp_forward.1} parent=1 // pred_region
      _
    $region17: #{mlp_forward.1} parent=1 // pred_fallthru
      _
    // Predicated region
    $region18: #{mlp_forward.1} parent=1 // pred_check
      _
    $region19: #{mlp_forward.1} parent=1 // pred_check_branch
      %28 = sbr.rel (0) target = $region21
    $region20: #{mlp_forward.1} parent=1 // pred_region
      _
    $region21: #{mlp_forward.1} parent=1 // pred_fallthru
      _
    // Predicated region
    $region22: #{mlp_forward.1} parent=1 // pred_check
      _
    $region23: #{mlp_forward.1} parent=1 // pred_check_branch
      %30 = sbr.rel (0) target = $region25
    $region24: #{mlp_forward.1} parent=1 // pred_region
      _
    $region25: #{mlp_forward.1} parent=1 // pred_fallthru
      _
    // Predicated region
    $region26: #{mlp_forward.1} parent=1 // pred_check
      _
    $region27: #{mlp_forward.1} parent=1 // pred_check_branch
      %32 = sbr.rel (0) target = $region29
    $region28: #{mlp_forward.1} parent=1 // pred_region
      _
    $region29: #{mlp_forward.1} parent=1 // pred_fallthru
      _
    // Predicated region
    $region30: #{mlp_forward.1} parent=1 // pred_check
      _
    $region31: #{mlp_forward.1} parent=1 // pred_check_branch
      %34 = sbr.rel (0) target = $region33
    $region32: #{mlp_forward.1} parent=1 // pred_region
      _
    $region33: #{mlp_forward.1} parent=1 // pred_fallthru
      _
    // Predicated region
    $region34: #{mlp_forward.1} parent=1 // pred_check
      _
    $region35: #{mlp_forward.1} parent=1 // pred_check_branch
      %36 = sbr.rel (0) target = $region37
    $region36: #{mlp_forward.1} parent=1 // pred_region
      _
    $region37: #{mlp_forward.1} parent=1 // pred_fallthru
      _
    // Predicated region
    $region38: #{mlp_forward.1} parent=1 // pred_check
      _
    $region39: #{mlp_forward.1} parent=1 // pred_check_branch
      %38 = sbr.rel (0) target = $region41
    $region40: #{mlp_forward.1} parent=1 // pred_region
      _
    $region41: #{mlp_forward.1} parent=1 // pred_fallthru
      _
    // Predicated region
    $region42: #{mlp_forward.1} parent=1 // pred_check
      _
    $region43: #{mlp_forward.1} parent=1 // pred_check_branch
      %40 = sbr.rel (0) target = $region45
    $region44: #{mlp_forward.1} parent=1 // pred_region
      _
    $region45: #{mlp_forward.1} parent=1 // pred_fallthru
      _
    // Predicated region
    $region46: #{mlp_forward.1} parent=1 // pred_check
      _
    $region47: #{mlp_forward.1} parent=1 // pred_check_branch
      %42 = sbr.rel (0) target = $region49
    $region48: #{mlp_forward.1} parent=1 // pred_region
      _
    $region49: #{mlp_forward.1} parent=1 // pred_fallthru
      _
    // Predicated region
    $region50: #{mlp_forward.1} parent=1 // pred_check
      _
    $region51: #{mlp_forward.1} parent=1 // pred_check_branch
      %44 = sbr.rel (0) target = $region53
    $region52: #{mlp_forward.1} parent=1 // pred_region
      _
    $region53: #{mlp_forward.1} parent=1 // pred_fallthru
      _
    %v46 = vld [vmem:[%s0] sm:$0xff]
    %v47 = vld [vmem:[%s1] sm:$0x3]
    %v48 = vld [vmem:[%s2] sm:$0x1]
    %v49 = vpack.c.bf16 %v46, %v46
    %v51 = vlaneseq
    %v52 = vshrl.u32 %v51, 7
    %v53 = vsub.s32 0, %v52
    %v54 = vrot.slane %v48, %v53
    %vm56 = vcmask 31744
    %v58 = vsel %vm56, %v49, 0
    %vm60 = vcmask 1041408
    %v62 = vsel %vm60, %v47, 0
    %64 = vmatprep.subr.bf16.mxu0 0
    %65 = vmatpush1.bf16.msra.mxu0 %v62
    %66 = vmatprep.subr.bf16.mxu0 0
    %67 = vmatpush1.bf16.msra.mxu0 0
    %68 = vmatprep.subr.bf16.mxu0 0
    %69 = vmatpush1.bf16.msra.mxu0 0
    %70 = vmatprep.subr.bf16.mxu0 0
    %71 = vmatpush1.bf16.msra.mxu0 0
    %72 = vmatprep.subr.bf16.mxu0 0
    %73 = vmatpush1.bf16.msra.mxu0 0
    %74 = vmatprep.subr.bf16.mxu0 0
    %75 = vmatpush1.bf16.msra.mxu0 0
    %76 = vmatprep.subr.bf16.mxu0 0
    %77 = vmatpush1.bf16.msra.mxu0 0
    %78 = vmatprep.subr.bf16.mxu0 0
    %79 = vmatpush1.bf16.msra.mxu0 0
    %80 = vmatprep.subr.bf16.mxu0 0
    %81 = vmatpush1.bf16.msra.mxu0 0
    %82 = vmatprep.subr.bf16.mxu0 0
    %83 = vmatpush1.bf16.msra.mxu0 0
    %84 = vmatprep.subr.bf16.mxu0 0
    %85 = vmatpush1.bf16.msra.mxu0 0
    %86 = vmatprep.subr.bf16.mxu0 0
    %87 = vmatpush1.bf16.msra.mxu0 0
    %88 = vmatprep.subr.bf16.mxu0 0
    %89 = vmatpush1.bf16.msra.mxu0 0
    %90 = vmatprep.subr.bf16.mxu0 0
    %91 = vmatpush1.bf16.msra.mxu0 0
    %92 = vmatprep.subr.bf16.mxu0 0
    %93 = vmatpush1.bf16.msra.mxu0 0
    %94 = vmatprep.subr.bf16.mxu0 0
    %95 = vmatpush1.bf16.msra.mxu0 0
    %96 = vmatprep.mubr.bf16.mxu0 0
    %97 = vmatmul.mubr.bf16.gmra.mrb[0].mxu0 %v58
    %v98 = vpop.f32.mrb[0].mxu0
    %v99 = vadd.f32 %v54, %v98
    %v100 = vpop.f32.mrb[0].mxu0
    %v101 = vpop.f32.mrb[0].mxu0
    %v102 = vpop.f32.mrb[0].mxu0
    %103 = vdwg.mxu0
    %v104 = vmax.f32 %v99, 0.0
    %v105 = vld [vmem:[%s3] sm:$0xf]
    %v106 = vld [vmem:[%s3 + $0x4] sm:$0xf]
    %v107 = vld [vmem:[%s4] sm:$0x1]
    %v108 = vpack.c.bf16 %v104, %v104
    %v110 = vlaneseq
    %v111 = vshrl.u32 %v110, 7
    %v112 = vsub.s32 0, %v111
    %v113 = vrot.slane %v107, %v112
    %v117 = vunpack.c.l.b16 %v105
    %v118 = vunpack.c.l.b16 %v106
    %v119 = vpack.c.b16 %v118, %v117
    %vm121 = vcmask 130048
    %v123 = vsel %vm121, %v108, 0
    %125 = vmatprep.subr.bf16.mxu0 0
    %126 = vmatpush1.bf16.msra.mxu0 %v119
    %127 = vmatprep.subr.bf16.mxu0 0
    %128 = vmatpush1.bf16.msra.mxu0 0
    %129 = vmatprep.subr.bf16.mxu0 0
    %130 = vmatpush1.bf16.msra.mxu0 0
    %131 = vmatprep.subr.bf16.mxu0 0
    %132 = vmatpush1.bf16.msra.mxu0 0
    %133 = vmatprep.subr.bf16.mxu0 0
    %134 = vmatpush1.bf16.msra.mxu0 0
    %135 = vmatprep.subr.bf16.mxu0 0
    %136 = vmatpush1.bf16.msra.mxu0 0
    %137 = vmatprep.subr.bf16.mxu0 0
    %138 = vmatpush1.bf16.msra.mxu0 0
    %139 = vmatprep.subr.bf16.mxu0 0
    %140 = vmatpush1.bf16.msra.mxu0 0
    %141 = vmatprep.subr.bf16.mxu0 0
    %142 = vmatpush1.bf16.msra.mxu0 0
    %143 = vmatprep.subr.bf16.mxu0 0
    %144 = vmatpush1.bf16.msra.mxu0 0
    %145 = vmatprep.subr.bf16.mxu0 0
    %146 = vmatpush1.bf16.msra.mxu0 0
    %147 = vmatprep.subr.bf16.mxu0 0
    %148 = vmatpush1.bf16.msra.mxu0 0
    %149 = vmatprep.subr.bf16.mxu0 0
    %150 = vmatpush1.bf16.msra.mxu0 0
    %151 = vmatprep.subr.bf16.mxu0 0
    %152 = vmatpush1.bf16.msra.mxu0 0
    %153 = vmatprep.subr.bf16.mxu0 0
    %154 = vmatpush1.bf16.msra.mxu0 0
    %155 = vmatprep.subr.bf16.mxu0 0
    %156 = vmatpush1.bf16.msra.mxu0 0
    %157 = vmatprep.mubr.bf16.mxu0 0
    %158 = vmatmul.mubr.bf16.gmra.mrb[0].mxu0 %v123
    %v159 = vpop.f32.mrb[0].mxu0
    %v160 = vadd.f32 %v113, %v159
    %v161 = vpop.f32.mrb[0].mxu0
    %v162 = vpop.f32.mrb[0].mxu0
    %v163 = vpop.f32.mrb[0].mxu0
    %164 = vdwg.mxu0
    %v165 = vmax.f32 %v160, 0.0
    %v166 = vld [vmem:[%s5] sm:$0xf]
    %v167 = vld [vmem:[%s5 + $0x4] sm:$0xf]
    %v168 = vld [vmem:[%s5 + $0x8] sm:$0xf]
    %v169 = vld [vmem:[%s5 + $0xc] sm:$0xf]
    %v170 = vld [vmem:[%s5 + $0x10] sm:$0xf]
    %v171 = vld [vmem:[%s5 + $0x14] sm:$0xf]
    %v172 = vld [vmem:[%s5 + $0x18] sm:$0xf]
    %v173 = vld [vmem:[%s5 + $0x1c] sm:$0xf]
    %v174 = vld [vmem:[%s6] sm:$0x1]
    %v175 = vpack.c.bf16 %v165, %v165
    %v177 = vlaneseq
    %v178 = vshrl.u32 %v177, 7
    %v179 = vsub.s32 0, %v178
    %v180 = vrot.slane %v174, %v179
    %v190 = vunpack.c.l.b16 %v166
    %v191 = vunpack.c.l.b16 %v167
    %v192 = vunpack.c.l.b16 %v168
    %v193 = vunpack.c.l.b16 %v169
    %v194 = vunpack.c.l.b16 %v170
    %v195 = vunpack.c.l.b16 %v171
    %v196 = vunpack.c.l.b16 %v172
    %v197 = vunpack.c.l.b16 %v173
    %v198 = vpack.c.b16 %v191, %v190
    %v199 = vpack.c.b16 %v193, %v192
    %v200 = vpack.c.b16 %v195, %v194
    %v201 = vpack.c.b16 %v197, %v196
    %vm206 = vcmask 523264
    %v208 = vsel %vm206, %v175, 0
    %210 = vmatprep.subr.bf16.mxu0 0
    %211 = vmatpush1.bf16.msra.mxu0 %v198
    %212 = vmatprep.subr.bf16.mxu0 0
    %213 = vmatpush1.bf16.msra.mxu0 %v199
    %214 = vmatprep.subr.bf16.mxu0 0
    %215 = vmatpush1.bf16.msra.mxu0 %v200
    %216 = vmatprep.subr.bf16.mxu0 0
    %217 = vmatpush1.bf16.msra.mxu0 %v201
    %218 = vmatprep.subr.bf16.mxu0 0
    %219 = vmatpush1.bf16.msra.mxu0 0
    %220 = vmatprep.subr.bf16.mxu0 0
    %221 = vmatpush1.bf16.msra.mxu0 0
    %222 = vmatprep.subr.bf16.mxu0 0
    %223 = vmatpush1.bf16.msra.mxu0 0
    %224 = vmatprep.subr.bf16.mxu0 0
    %225 = vmatpush1.bf16.msra.mxu0 0
    %226 = vmatprep.subr.bf16.mxu0 0
    %227 = vmatpush1.bf16.msra.mxu0 0
    %228 = vmatprep.subr.bf16.mxu0 0
    %229 = vmatpush1.bf16.msra.mxu0 0
    %230 = vmatprep.subr.bf16.mxu0 0
    %231 = vmatpush1.bf16.msra.mxu0 0
    %232 = vmatprep.subr.bf16.mxu0 0
    %233 = vmatpush1.bf16.msra.mxu0 0
    %234 = vmatprep.subr.bf16.mxu0 0
    %235 = vmatpush1.bf16.msra.mxu0 0
    %236 = vmatprep.subr.bf16.mxu0 0
    %237 = vmatpush1.bf16.msra.mxu0 0
    %238 = vmatprep.subr.bf16.mxu0 0
    %239 = vmatpush1.bf16.msra.mxu0 0
    %240 = vmatprep.subr.bf16.mxu0 0
    %241 = vmatpush1.bf16.msra.mxu0 0
    %242 = vmatprep.mubr.bf16.mxu0 0
    %243 = vmatmul.mubr.bf16.gmra.mrb[0].mxu0 %v208
    %v244 = vpop.f32.mrb[0].mxu0
    %v245 = vadd.f32 %v180, %v244
    %v246 = vpop.f32.mrb[0].mxu0
    %v247 = vpop.f32.mrb[0].mxu0
    %v248 = vpop.f32.mrb[0].mxu0
    %249 = vdwg.mxu0
    %v250 = vmax.f32 %v245, 0.0
    %v251 = vld [vmem:[%s7] sm:$0xf]
    %v252 = vld [vmem:[%s7 + $0x4] sm:$0xf]
    %v253 = vld [vmem:[%s7 + $0x8] sm:$0xf]
    %v254 = vld [vmem:[%s7 + $0xc] sm:$0xf]
    %v255 = vld [vmem:[%s7 + $0x10] sm:$0xf]
    %v256 = vld [vmem:[%s7 + $0x14] sm:$0xf]
    %v257 = vld [vmem:[%s7 + $0x18] sm:$0xf]
    %v258 = vld [vmem:[%s7 + $0x1c] sm:$0xf]
    %v259 = vld [vmem:[%s8] sm:$0x1]
    %v260 = vpack.c.bf16 %v250, %v250
    %v262 = vlaneseq
    %v263 = vshrl.u32 %v262, 7
    %v264 = vsub.s32 0, %v263
    %v265 = vrot.slane %v259, %v264
    %v275 = vunpack.c.l.b16 %v251
    %v276 = vunpack.c.l.b16 %v252
    %v277 = vunpack.c.l.b16 %v253
    %v278 = vunpack.c.l.b16 %v254
    %v279 = vunpack.c.l.b16 %v255
    %v280 = vunpack.c.l.b16 %v256
    %v281 = vunpack.c.l.b16 %v257
    %v282 = vunpack.c.l.b16 %v258
    %v283 = vpack.c.b16 %v276, %v275
    %v284 = vpack.c.b16 %v278, %v277
    %v285 = vpack.c.b16 %v280, %v279
    %v286 = vpack.c.b16 %v282, %v281
    %v292 = vsel %vm206, %v260, 0
    %294 = vmatprep.subr.bf16.mxu0 0
    %295 = vmatpush1.bf16.msra.mxu0 %v283
    %296 = vmatprep.subr.bf16.mxu0 0
    %297 = vmatpush1.bf16.msra.mxu0 %v284
    %298 = vmatprep.subr.bf16.mxu0 0
    %299 = vmatpush1.bf16.msra.mxu0 %v285
    %300 = vmatprep.subr.bf16.mxu0 0
    %301 = vmatpush1.bf16.msra.mxu0 %v286
    %302 = vmatprep.subr.bf16.mxu0 0
    %303 = vmatpush1.bf16.msra.mxu0 0
    %304 = vmatprep.subr.bf16.mxu0 0
    %305 = vmatpush1.bf16.msra.mxu0 0
    %306 = vmatprep.subr.bf16.mxu0 0
    %307 = vmatpush1.bf16.msra.mxu0 0
    %308 = vmatprep.subr.bf16.mxu0 0
    %309 = vmatpush1.bf16.msra.mxu0 0
    %310 = vmatprep.subr.bf16.mxu0 0
    %311 = vmatpush1.bf16.msra.mxu0 0
    %312 = vmatprep.subr.bf16.mxu0 0
    %313 = vmatpush1.bf16.msra.mxu0 0
    %314 = vmatprep.subr.bf16.mxu0 0
    %315 = vmatpush1.bf16.msra.mxu0 0
    %316 = vmatprep.subr.bf16.mxu0 0
    %317 = vmatpush1.bf16.msra.mxu0 0
    %318 = vmatprep.subr.bf16.mxu0 0
    %319 = vmatpush1.bf16.msra.mxu0 0
    %320 = vmatprep.subr.bf16.mxu0 0
    %321 = vmatpush1.bf16.msra.mxu0 0
    %322 = vmatprep.subr.bf16.mxu0 0
    %323 = vmatpush1.bf16.msra.mxu0 0
    %324 = vmatprep.subr.bf16.mxu0 0
    %325 = vmatpush1.bf16.msra.mxu0 0
    %326 = vmatprep.mubr.bf16.mxu0 0
    %327 = vmatmul.mubr.bf16.gmra.mrb[0].mxu0 %v292
    %v328 = vpop.f32.mrb[0].mxu0
    %v329 = vadd.f32 %v265, %v328
    %v330 = vpop.f32.mrb[0].mxu0
    %v331 = vpop.f32.mrb[0].mxu0
    %v332 = vpop.f32.mrb[0].mxu0
    %333 = vdwg.mxu0
    %v334 = vmax.f32 %v329, 0.0
    %v335 = vld [vmem:[%s9] sm:$0xf]
    %v336 = vld [vmem:[%s9 + $0x4] sm:$0xf]
    %v337 = vld [vmem:[%s9 + $0x8] sm:$0xf]
    %v338 = vld [vmem:[%s9 + $0xc] sm:$0xf]
    %v339 = vld [vmem:[%s9 + $0x10] sm:$0xf]
    %v340 = vld [vmem:[%s9 + $0x14] sm:$0xf]
    %v341 = vld [vmem:[%s9 + $0x18] sm:$0xf]
    %v342 = vld [vmem:[%s9 + $0x1c] sm:$0xf]
    %v343 = vld [vmem:[%s10] sm:$0x1]
    %v344 = vpack.c.bf16 %v334, %v334
    %v346 = vlaneseq
    %v347 = vshrl.u32 %v346, 7
    %v348 = vsub.s32 0, %v347
    %v349 = vrot.slane %v343, %v348
    %v359 = vunpack.c.l.b16 %v335
    %v360 = vunpack.c.l.b16 %v336
    %v361 = vunpack.c.l.b16 %v337
    %v362 = vunpack.c.l.b16 %v338
    %v363 = vunpack.c.l.b16 %v339
    %v364 = vunpack.c.l.b16 %v340
    %v365 = vunpack.c.l.b16 %v341
    %v366 = vunpack.c.l.b16 %v342
    %v367 = vpack.c.b16 %v360, %v359
    %v368 = vpack.c.b16 %v362, %v361
    %v369 = vpack.c.b16 %v364, %v363
    %v370 = vpack.c.b16 %v366, %v365
    %v376 = vsel %vm206, %v344, 0
    %378 = vmatprep.subr.bf16.mxu0 0
    %379 = vmatpush1.bf16.msra.mxu0 %v367
    %380 = vmatprep.subr.bf16.mxu0 0
    %381 = vmatpush1.bf16.msra.mxu0 %v368
    %382 = vmatprep.subr.bf16.mxu0 0
    %383 = vmatpush1.bf16.msra.mxu0 %v369
    %384 = vmatprep.subr.bf16.mxu0 0
    %385 = vmatpush1.bf16.msra.mxu0 %v370
    %386 = vmatprep.subr.bf16.mxu0 0
    %387 = vmatpush1.bf16.msra.mxu0 0
    %388 = vmatprep.subr.bf16.mxu0 0
    %389 = vmatpush1.bf16.msra.mxu0 0
    %390 = vmatprep.subr.bf16.mxu0 0
    %391 = vmatpush1.bf16.msra.mxu0 0
    %392 = vmatprep.subr.bf16.mxu0 0
    %393 = vmatpush1.bf16.msra.mxu0 0
    %394 = vmatprep.subr.bf16.mxu0 0
    %395 = vmatpush1.bf16.msra.mxu0 0
    %396 = vmatprep.subr.bf16.mxu0 0
    %397 = vmatpush1.bf16.msra.mxu0 0
    %398 = vmatprep.subr.bf16.mxu0 0
    %399 = vmatpush1.bf16.msra.mxu0 0
    %400 = vmatprep.subr.bf16.mxu0 0
    %401 = vmatpush1.bf16.msra.mxu0 0
    %402 = vmatprep.subr.bf16.mxu0 0
    %403 = vmatpush1.bf16.msra.mxu0 0
    %404 = vmatprep.subr.bf16.mxu0 0
    %405 = vmatpush1.bf16.msra.mxu0 0
    %406 = vmatprep.subr.bf16.mxu0 0
    %407 = vmatpush1.bf16.msra.mxu0 0
    %408 = vmatprep.subr.bf16.mxu0 0
    %409 = vmatpush1.bf16.msra.mxu0 0
    %410 = vmatprep.mubr.bf16.mxu0 0
    %411 = vmatmul.mubr.bf16.gmra.mrb[0].mxu0 %v376
    %v412 = vpop.f32.mrb[0].mxu0
    %v413 = vadd.f32 %v349, %v412
    %v414 = vpop.f32.mrb[0].mxu0
    %v415 = vpop.f32.mrb[0].mxu0
    %v416 = vpop.f32.mrb[0].mxu0
    %417 = vdwg.mxu0
    %v418 = vmax.f32 %v413, 0.0
    %v419 = vld [vmem:[%s11] sm:$0xf]
    %v420 = vld [vmem:[%s11 + $0x4] sm:$0xf]
    %v421 = vld [vmem:[%s11 + $0x8] sm:$0xf]
    %v422 = vld [vmem:[%s11 + $0xc] sm:$0xf]
    %v423 = vld [vmem:[%s11 + $0x10] sm:$0xf]
    %v424 = vld [vmem:[%s11 + $0x14] sm:$0xf]
    %v425 = vld [vmem:[%s11 + $0x18] sm:$0xf]
    %v426 = vld [vmem:[%s11 + $0x1c] sm:$0xf]
    %v427 = vld [vmem:[%s12] sm:$0x1]
    %v428 = vpack.c.bf16 %v418, %v418
    %v430 = vlaneseq
    %v431 = vshrl.u32 %v430, 7
    %v432 = vsub.s32 0, %v431
    %v433 = vrot.slane %v427, %v432
    %v443 = vunpack.c.l.b16 %v419
    %v444 = vunpack.c.l.b16 %v420
    %v445 = vunpack.c.l.b16 %v421
    %v446 = vunpack.c.l.b16 %v422
    %v447 = vunpack.c.l.b16 %v423
    %v448 = vunpack.c.l.b16 %v424
    %v449 = vunpack.c.l.b16 %v425
    %v450 = vunpack.c.l.b16 %v426
    %v451 = vpack.c.b16 %v444, %v443
    %v452 = vpack.c.b16 %v446, %v445
    %v453 = vpack.c.b16 %v448, %v447
    %v454 = vpack.c.b16 %v450, %v449
    %v460 = vsel %vm206, %v428, 0
    %462 = vmatprep.subr.bf16.mxu0 0
    %463 = vmatpush1.bf16.msra.mxu0 %v451
    %464 = vmatprep.subr.bf16.mxu0 0
    %465 = vmatpush1.bf16.msra.mxu0 %v452
    %466 = vmatprep.subr.bf16.mxu0 0
    %467 = vmatpush1.bf16.msra.mxu0 %v453
    %468 = vmatprep.subr.bf16.mxu0 0
    %469 = vmatpush1.bf16.msra.mxu0 %v454
    %470 = vmatprep.subr.bf16.mxu0 0
    %471 = vmatpush1.bf16.msra.mxu0 0
    %472 = vmatprep.subr.bf16.mxu0 0
    %473 = vmatpush1.bf16.msra.mxu0 0
    %474 = vmatprep.subr.bf16.mxu0 0
    %475 = vmatpush1.bf16.msra.mxu0 0
    %476 = vmatprep.subr.bf16.mxu0 0
    %477 = vmatpush1.bf16.msra.mxu0 0
    %478 = vmatprep.subr.bf16.mxu0 0
    %479 = vmatpush1.bf16.msra.mxu0 0
    %480 = vmatprep.subr.bf16.mxu0 0
    %481 = vmatpush1.bf16.msra.mxu0 0
    %482 = vmatprep.subr.bf16.mxu0 0
    %483 = vmatpush1.bf16.msra.mxu0 0
    %484 = vmatprep.subr.bf16.mxu0 0
    %485 = vmatpush1.bf16.msra.mxu0 0
    %486 = vmatprep.subr.bf16.mxu0 0
    %487 = vmatpush1.bf16.msra.mxu0 0
    %488 = vmatprep.subr.bf16.mxu0 0
    %489 = vmatpush1.bf16.msra.mxu0 0
    %490 = vmatprep.subr.bf16.mxu0 0
    %491 = vmatpush1.bf16.msra.mxu0 0
    %492 = vmatprep.subr.bf16.mxu0 0
    %493 = vmatpush1.bf16.msra.mxu0 0
    %494 = vmatprep.mubr.bf16.mxu0 0
    %495 = vmatmul.mubr.bf16.gmra.mrb[0].mxu0 %v460
    %v496 = vpop.f32.mrb[0].mxu0
    %v497 = vadd.f32 %v433, %v496
    %v498 = vpop.f32.mrb[0].mxu0
    %v499 = vpop.f32.mrb[0].mxu0
    %v500 = vpop.f32.mrb[0].mxu0
    %501 = vdwg.mxu0
    %v502 = vxor.u32 %v497, 2147483648
    %v503 = vmul.f32 %v502, 1.442695
    %v504 = vpow.pop %v503
    %v505 = vadd.f32 %v504, 1.0
    %v506 = vrcp.pop %v505
    %v507 = vmul.f32 1.0, %v506
    %v508 = vlaneseq
    %v509 = vand.u32 %v508, 127
    %vm510 = vcmp.lt.s32.totalorder %v509, 16
    %v511 = vsel %vm510, %v507, 0.0
    %v512 = vand.u32 2147483647, %v511
    %513 = vadd.xlane.f32.xlu0 %v512
    %v514 = vpop.xlane.xlu0 %513
    %v515 = vmax.f32 %v514, 1e-12
    %v516 = vrcp.pop %v515
    %v517 = vmul.f32 %v511, %v516
    %518 = vst [vmem:[#allocation2] sm:$0xff] %v517
    // Predicated region
    $region54: #{mlp_forward.1} parent=1 // pred_check
      _
    $region55: #{mlp_forward.1} parent=1 // pred_check_branch
      %520 = sbr.rel (0) target = $region57
    $region56: #{mlp_forward.1} parent=1 // pred_region
      %s522 = ssub.s32 128, 128
      %523 = vsyncadd [#allocation3], %s522
      %s525 = sshll.u32 [#allocation2], 4
      %s526 = int_to_ptr.vmem [resolvable:$true] %s525
      %528 = dma.vmem_to_hbm [thread:$0]  %s526, 128, %s13, [#allocation3]
    $region57: #{mlp_forward.1} parent=1 // pred_fallthru
      _
    // Predicated region
    $region58: #{mlp_forward.1} parent=1 // pred_check
      _
    $region59: #{mlp_forward.1} parent=1 // pred_check_branch
      %530 = sbr.rel (0) target = $region61
    $region60: #{mlp_forward.1} parent=1 // pred_region
      %531 = dma.done [#allocation3], 128
    $region61: #{mlp_forward.1} parent=1 // pred_fallthru
      _
    %532 = vsyncpa [#allocation3], 1

</llo_original>
